<compile_context>
chip_gen: v5e
topology: v5e:2x2
jax: 0.10.0
libtpu: 0.0.40
codegen_flags: <defaults>
</compile_context>

<pallas_src>
import functools

import jax
import jax.numpy as jnp
from jax import lax
from jax.experimental import pallas as pl
from jax.experimental.pallas import tpu as pltpu
import numpy as np


def _round_up(a, b):
    return ((a + b - 1) // b) * b


def aff1_kernel(x_hbm, wi_ref, wd_ref, wo_ref, mask_ref, o_ref, xbuf, abuf, sem,
                *, W, M, Mp2r):
    # x_hbm   : (N, Cin, Lp)   padded, spatially-flattened input (HBM, pl.ANY)
    # wi_ref  : (2Hf, Cin)     merged project_in weight            (grid-resident VMEM)
    # wd_ref  : (2Hf, 9)       depthwise 3x3 weights, tap k = dy*3 + dx
    # wo_ref  : (Cout, 2Hf)    project_out weight
    # mask_ref: (2, M)         row0: (col != 0), row1: (col != W-1)   (f32 0/1)
    # o_ref   : (1, Cout, M)   output tile, M = TH*W pixels (lane-dense)
    # xbuf    : (Cin, Mp2r)    VMEM scratch: halo'd input slab for this tile
    # abuf    : (2Hf, M)       VMEM scratch: dwconv output, gated in place, fed to MXU
    # sem     : DMA completion semaphore
    n = pl.program_id(0)
    h = pl.program_id(1)

    # --- fetch the overlapping halo window for this row tile straight from HBM ---
    start = h * M
    if M % 128 == 0:
        start = pl.multiple_of(start, 128)
    cp = pltpu.make_async_copy(x_hbm.at[n, :, pl.ds(start, Mp2r)], xbuf, sem)
    cp.start()
    cp.wait()
    # TODO(synk): double-buffer this halo DMA across grid steps to fully overlap it with
    # compute (input traffic is only Cin channels, so the exposed cost is small).

    hf2 = wi_ref.shape[0]
    hf = hf2 // 2

    xw = xbuf[...].astype(jnp.float32)                          # (Cin, Mp2r)

    # project_in: 1x1 conv == one merged channel matmul, pixels on the lane axis.
    t = jnp.dot(wi_ref[...].astype(jnp.float32), xw,
                preferred_element_type=jnp.float32)             # (2Hf, Mp2r)

    wd = wd_ref[...].astype(jnp.float32)                        # (2Hf, 9)
    maskL = mask_ref[0:1, :]                                    # (1, M)
    maskR = mask_ref[1:2, :]

    # Depthwise 3x3 on the flattened halo slab.  Output pixel m (= r*W + c) with tap
    # (dy, dx) in {0,1,2}^2 reads slab column m + dy*W + dx (front pad of W+1 zeros in
    # the wrapper makes every offset non-negative).  Hoist the three dx lane shifts once
    # (sL/sC/sR); the dy taps are then dy*W-offset slices of those, which are vreg-
    # aligned (no XLU shift) whenever W % 128 == 0.
    L = M + 2 * W
    sL = t[:, 0:L]                                              # dx = 0  (left taps)
    sC = t[:, 1:1 + L]                                          # dx = 1  (center)
    sR = t[:, 2:2 + L]                                          # dx = 2  (right)
    wcol = [wd[:, k:k + 1] for k in range(9)]                   # per-channel tap weights

    accL = (wcol[0] * sL[:, 0:M] + wcol[3] * sL[:, W:W + M]
            + wcol[6] * sL[:, 2 * W:2 * W + M])
    accC = (wcol[1] * sC[:, 0:M] + wcol[4] * sC[:, W:W + M]
            + wcol[7] * sC[:, 2 * W:2 * W + M])
    accR = (wcol[2] * sR[:, 0:M] + wcol[5] * sR[:, W:W + M]
            + wcol[8] * sR[:, 2 * W:2 * W + M])
    # maskL/maskR zero the left/right taps that would wrap across the W boundary,
    # reproducing the conv's zero padding along W (row padding comes from the halo zeros).
    abuf[...] = maskL * accL + accC + maskR * accR              # (2Hf, M)

    # Gating; the second line uses the *updated* x1, exactly as in the PyTorch forward.
    def sig(v):                                                 # stable sigmoid via EUP tanh
        return 0.5 * (jnp.tanh(0.5 * v) + 1.0)

    y1 = abuf[0:hf, :]
    y2 = abuf[hf:hf2, :]
    abuf[0:hf, :] = sig(y1) * y2                                # a1
    abuf[hf:hf2, :] = sig(y2) * abuf[0:hf, :]                   # a2 = sig(y2) * a1

    # project_out: one fused K=2Hf MXU matmul over the gated slab.
    out = jnp.dot(wo_ref[...].astype(jnp.float32), abuf[...],
                  preferred_element_type=jnp.float32)           # (Cout, M)
    o_ref[0] = out.astype(o_ref.dtype)


def _pick_tile_rows(H, W, cin, cout, hf2, *, budget_bytes=28 << 20, max_pixels=64 * 1024):
    """Largest row tile TH (dividing H, lane-dense output) fitting the VMEM budget."""
    def vmem_est(th):
        m = th * W
        mp2r = _round_up((th + 2) * W + 2, 128)
        io = (cin * mp2r + 2 * cout * m + hf2 * m + 4 * m) * 4   # xbuf + dbl-buf out + abuf + masks
        temps = 12 * hf2 * m * 4                                 # t, sL/sC/sR, accs, gating
        return io + temps

    cands = [t for t in range(1, H + 1)
             if H % t == 0
             and ((t * W) % 128 == 0 or t == H)
             and t * W <= max_pixels
             and vmem_est(t) <= budget_bytes]
    dense = [t for t in cands if (t * W) % 128 == 0]
    if dense:
        return max(dense)
    if cands:
        return max(cands)
    return 1


def aff1_pallas(tensors, w_in_pt, w_dw_pt, w_out_pt, *, tile_rows=None):
    """tensors: list of NCHW arrays. Weights in PyTorch conv layouts:
       w_in_pt (2Hf, Cin, 1, 1), w_dw_pt (2Hf, 1, 3, 3), w_out_pt (Cout, 2Hf, 1, 1)."""
    hf2 = w_in_pt.shape[0]
    cout = w_out_pt.shape[0]

    x = jnp.concatenate(tensors, axis=1)                        # (N, Cin, H, W), NCHW
    N, Cin, H, W = x.shape

    # ---- parameter re-layout (plain JAX glue) ----
    wi = w_in_pt[:, :, 0, 0]                                    # (2Hf, Cin)
    wd = w_dw_pt[:, 0, :, :].reshape(hf2, 9)                    # (2Hf, 9), tap k = dy*3+dx
    wo = w_out_pt[:, :, 0, 0]                                   # (Cout, 2Hf)

    # ---- row tile (largest that fits the per-step VMEM budget, lane-dense output) ----
    TH = _pick_tile_rows(H, W, Cin, cout, hf2) if tile_rows is None else tile_rows
    assert H % TH == 0, "tile_rows must divide H"
    nT = H // TH
    M = TH * W                                                  # output pixels per tile
    Mp2 = (TH + 2) * W + 2                                      # halo'd slab length used
    Mp2r = _round_up(Mp2, 128)                                  # lane-dense input DMA
    Lp = (nT - 1) * M + Mp2r                                    # every tile window fits

    # ---- single flat zero-pad: W+1 zeros in front (top halo row + 1 elem), rest behind
    #      (bottom halo row + 1 elem + round-up).  Pixel (r,c) lands at (r+1)*W + c + 1. ----
    xf = x.reshape(N, Cin, H * W)
    xpf = jnp.pad(xf, ((0, 0), (0, 0), (W + 1, Lp - H * W - (W + 1))))   # (N, Cin, Lp)

    # ---- column-boundary masks (periodic in W, identical for every tile) ----
    col = jnp.arange(M, dtype=jnp.int32) % W
    mask = jnp.stack([(col != 0), (col != W - 1)]).astype(jnp.float32)   # (2, M)

    # ---- advisory cost estimate for the XLA scheduler ----
    pix = N * H * W
    flops = 2 * pix * hf2 * (Cin + 9 + cout) + 6 * pix * hf2
    transc = pix * hf2
    bytes_acc = (x.size + N * cout * H * W) * x.dtype.itemsize \
                + (wi.size + wd.size + wo.size) * 4

    kern = functools.partial(aff1_kernel, W=W, M=M, Mp2r=Mp2r)
    out = pl.pallas_call(
        kern,
        out_shape=jax.ShapeDtypeStruct((N, cout, H * W), x.dtype),
        grid=(N, nT),
        in_specs=[
            pl.BlockSpec(memory_space=pl.ANY),                  # input stays in HBM
            pl.BlockSpec((hf2, Cin), lambda n, h: (0, 0)),      # grid-resident weights
            pl.BlockSpec((hf2, 9), lambda n, h: (0, 0)),
            pl.BlockSpec((cout, hf2), lambda n, h: (0, 0)),
            pl.BlockSpec((2, M), lambda n, h: (0, 0)),
        ],
        out_specs=pl.BlockSpec((1, cout, M), lambda n, h: (n, 0, h)),
        scratch_shapes=[
            pltpu.VMEM((Cin, Mp2r), x.dtype),                   # halo'd input slab
            pltpu.VMEM((hf2, M), jnp.float32),                  # dwconv / gated activations
            pltpu.SemaphoreType.DMA(()),
        ],
        compiler_params=pltpu.CompilerParams(
            dimension_semantics=("parallel", "parallel"),
            vmem_limit_bytes=48 * 1024 * 1024),
        cost_estimate=pl.CostEstimate(flops=int(flops),
                                      transcendentals=int(transc),
                                      bytes_accessed=int(bytes_acc)),
    )(xpf, wi, wd, wo, mask)

    # Output is already NCHW-ordered; splitting the minor dim back to (H, W) is free.
    return out.reshape(N, cout, H, W)


def aff1_reference(tensors, w_in_pt, w_dw_pt, w_out_pt):
    """Pure-JAX reference matching the PyTorch forward exactly (NCHW)."""
    dn = ('NCHW', 'OIHW', 'NCHW')
    x = jnp.concatenate(tensors, axis=1)
    t = lax.conv_general_dilated(x, w_in_pt, (1, 1), 'VALID', dimension_numbers=dn)
    d = lax.conv_general_dilated(t, w_dw_pt, (1, 1), ((1, 1), (1, 1)),
                                 dimension_numbers=dn,
                                 feature_group_count=w_dw_pt.shape[0])
    hf = d.shape[1] // 2
    x1, x2 = d[:, :hf], d[:, hf:]
    x1 = jax.nn.sigmoid(x1) * x2
    x2 = jax.nn.sigmoid(x2) * x1
    z = jnp.concatenate([x1, x2], axis=1)
    return lax.conv_general_dilated(z, w_out_pt, (1, 1), 'VALID', dimension_numbers=dn)


if __name__ == "__main__":
    key = jax.random.PRNGKey(0)
    kx1, kx2, kwi, kwd, kwo = jax.random.split(key, 5)

    # AFF1(in_channel=4, out_channel=4) fed with two 2-channel tensors.
    N, C1, C2, H, W = 2, 2, 2, 16, 16
    cin = C1 + C2
    cout = 4
    hf = cin * 2            # hidden_features (ffn_expansion_factor=2)

    t1 = jax.random.normal(kx1, (N, C1, H, W), jnp.float32)
    t2 = jax.random.normal(kx2, (N, C2, H, W), jnp.float32)

    # Deterministic synthetic parameters (PyTorch conv weight shapes, bias=False).
    w_in_pt = 0.2 * jax.random.normal(kwi, (2 * hf, cin, 1, 1), jnp.float32)
    w_dw_pt = 0.2 * jax.random.normal(kwd, (2 * hf, 1, 3, 3), jnp.float32)
    w_out_pt = 0.2 * jax.random.normal(kwo, (cout, 2 * hf, 1, 1), jnp.float32)

    ref = jax.block_until_ready(aff1_reference([t1, t2], w_in_pt, w_dw_pt, w_out_pt))

    # Auto-picked tile (whole image here): grid (N, 1) -> still >= 2 parallel steps (batch).
    out = jax.block_until_ready(aff1_pallas([t1, t2], w_in_pt, w_dw_pt, w_out_pt))
    assert out.shape == ref.shape == (N, cout, H, W)
    np.testing.assert_allclose(np.asarray(out), np.asarray(ref), rtol=1e-3, atol=1e-3)

    # Forced spatial tiling (TH=8): exercises the overlapping-halo DMA path across tiles.
    out2 = jax.block_until_ready(aff1_pallas([t1, t2], w_in_pt, w_dw_pt, w_out_pt,
                                             tile_rows=8))
    np.testing.assert_allclose(np.asarray(out2), np.asarray(ref), rtol=1e-3, atol=1e-3)

    print("KERNEL_OK")
</pallas_src>

<mosaic_0001>
module attributes {stable_mosaic.version = 11 : i64} {
  func.func @aff1_kernel(%arg0: i32, %arg1: i32, %arg2: memref<2x4x384xf32, #tpu.memory_space<any>>, %arg3: memref<16x4xf32, #tpu.memory_space<vmem>>, %arg4: memref<16x9xf32, #tpu.memory_space<vmem>>, %arg5: memref<4x16xf32, #tpu.memory_space<vmem>>, %arg6: memref<2x256xf32, #tpu.memory_space<vmem>>, %arg7: memref<1x4x256xf32, #tpu.memory_space<vmem>>, %arg8: memref<4x384xf32, #tpu.memory_space<vmem>>, %arg9: memref<16x256xf32, #tpu.memory_space<vmem>>, %arg10: memref<!tpu.dma_semaphore, #tpu.memory_space<semaphore_mem>>) attributes {dimension_semantics = [#tpu.dimension_semantics<parallel>, #tpu.dimension_semantics<parallel>], iteration_bounds = array<i64: 2, 1>, scalar_prefetch = 0 : i64, scratch_operands = 3 : i64, tpu.core_type = #tpu.core_type<tc>, window_params = [{}, {pipeline_mode = #tpu.pipeline_mode<synchronous>, transform_indices = @transform_1, window_bounds = array<i64: 16, 4>}, {pipeline_mode = #tpu.pipeline_mode<synchronous>, transform_indices = @transform_2, window_bounds = array<i64: 16, 9>}, {pipeline_mode = #tpu.pipeline_mode<synchronous>, transform_indices = @transform_3, window_bounds = array<i64: 4, 16>}, {pipeline_mode = #tpu.pipeline_mode<synchronous>, transform_indices = @transform_4, window_bounds = array<i64: 2, 256>}, {transform_indices = @transform_5, window_bounds = array<i64: 1, 4, 256>}]} {
    %c256_i32 = arith.constant 256 : i32
    %0 = arith.muli %arg1, %c256_i32 : i32
    %1 = tpu.assume_multiple %0, 128 : i32
    %c0_i32 = arith.constant 0 : i32
    %2 = tpu.memref_slice %arg2[%arg0, %c0_i32, %1] : memref<2x4x384xf32, #tpu.memory_space<any>> -> memref<1x4x384xf32, #tpu.memory_space<any>>
    %3 = tpu.memref_squeeze %2 : memref<1x4x384xf32, #tpu.memory_space<any>> -> memref<4x384xf32, #tpu.memory_space<any>>
    tpu.enqueue_dma source(%3 : memref<4x384xf32, #tpu.memory_space<any>>) target(%arg8 : memref<4x384xf32, #tpu.memory_space<vmem>>) target_semaphore(%arg10 : memref<!tpu.dma_semaphore, #tpu.memory_space<semaphore_mem>>)
    %c0_i32_0 = arith.constant 0 : i32
    %4 = tpu.memref_slice %arg2[%arg0, %c0_i32_0, %1] : memref<2x4x384xf32, #tpu.memory_space<any>> -> memref<1x4x384xf32, #tpu.memory_space<any>>
    %5 = tpu.memref_squeeze %4 : memref<1x4x384xf32, #tpu.memory_space<any>> -> memref<4x384xf32, #tpu.memory_space<any>>
    tpu.wait_dma2 semaphore(%arg10 : memref<!tpu.dma_semaphore, #tpu.memory_space<semaphore_mem>>) src(%5 : memref<4x384xf32, #tpu.memory_space<any>>) dst(%arg8 : memref<4x384xf32, #tpu.memory_space<vmem>>)
    %c0 = arith.constant 0 : index
    %c0_1 = arith.constant 0 : index
    %6 = vector.load %arg8[%c0, %c0_1] : memref<4x384xf32, #tpu.memory_space<vmem>>, vector<4x384xf32>
    %c0_2 = arith.constant 0 : index
    %c0_3 = arith.constant 0 : index
    %7 = vector.load %arg3[%c0_2, %c0_3] : memref<16x4xf32, #tpu.memory_space<vmem>>, vector<16x4xf32>
    %cst = arith.constant dense<0.000000e+00> : vector<16x384xf32>
    %8 = tpu.matmul %7, %6, %cst {dimension_numbers = #tpu.dot_dimension_numbers<[1], [0], [0], [1], [0, 0, 1, 1], [], []>} : vector<16x4xf32>, vector<4x384xf32>, vector<16x384xf32> -> vector<16x384xf32>
    %c0_4 = arith.constant 0 : index
    %c0_5 = arith.constant 0 : index
    %9 = vector.load %arg4[%c0_4, %c0_5] : memref<16x9xf32, #tpu.memory_space<vmem>>, vector<16x9xf32>
    %c0_6 = arith.constant 0 : index
    %c0_7 = arith.constant 0 : index
    %10 = vector.load %arg6[%c0_6, %c0_7] : memref<2x256xf32, #tpu.memory_space<vmem>>, vector<1x256xf32>
    %c1 = arith.constant 1 : index
    %c0_8 = arith.constant 0 : index
    %11 = vector.load %arg6[%c1, %c0_8] : memref<2x256xf32, #tpu.memory_space<vmem>>, vector<1x256xf32>
    %12 = vector.extract_strided_slice %8 {offsets = [0, 0], sizes = [16, 288], strides = [1, 1]} : vector<16x384xf32> to vector<16x288xf32>
    %13 = vector.extract_strided_slice %8 {offsets = [0, 1], sizes = [16, 288], strides = [1, 1]} : vector<16x384xf32> to vector<16x288xf32>
    %14 = vector.extract_strided_slice %8 {offsets = [0, 2], sizes = [16, 288], strides = [1, 1]} : vector<16x384xf32> to vector<16x288xf32>
    %15 = vector.extract_strided_slice %9 {offsets = [0, 0], sizes = [16, 1], strides = [1, 1]} : vector<16x9xf32> to vector<16x1xf32>
    %16 = vector.extract_strided_slice %9 {offsets = [0, 1], sizes = [16, 1], strides = [1, 1]} : vector<16x9xf32> to vector<16x1xf32>
    %17 = vector.extract_strided_slice %9 {offsets = [0, 2], sizes = [16, 1], strides = [1, 1]} : vector<16x9xf32> to vector<16x1xf32>
    %18 = vector.extract_strided_slice %9 {offsets = [0, 3], sizes = [16, 1], strides = [1, 1]} : vector<16x9xf32> to vector<16x1xf32>
    %19 = vector.extract_strided_slice %9 {offsets = [0, 4], sizes = [16, 1], strides = [1, 1]} : vector<16x9xf32> to vector<16x1xf32>
    %20 = vector.extract_strided_slice %9 {offsets = [0, 5], sizes = [16, 1], strides = [1, 1]} : vector<16x9xf32> to vector<16x1xf32>
    %21 = vector.extract_strided_slice %9 {offsets = [0, 6], sizes = [16, 1], strides = [1, 1]} : vector<16x9xf32> to vector<16x1xf32>
    %22 = vector.extract_strided_slice %9 {offsets = [0, 7], sizes = [16, 1], strides = [1, 1]} : vector<16x9xf32> to vector<16x1xf32>
    %23 = vector.extract_strided_slice %9 {offsets = [0, 8], sizes = [16, 1], strides = [1, 1]} : vector<16x9xf32> to vector<16x1xf32>
    %24 = vector.extract_strided_slice %12 {offsets = [0, 0], sizes = [16, 256], strides = [1, 1]} : vector<16x288xf32> to vector<16x256xf32>
    %25 = vector.broadcast %15 : vector<16x1xf32> to vector<16x256xf32>
    %26 = arith.mulf %25, %24 : vector<16x256xf32>
    %27 = vector.extract_strided_slice %12 {offsets = [0, 16], sizes = [16, 256], strides = [1, 1]} : vector<16x288xf32> to vector<16x256xf32>
    %28 = vector.broadcast %18 : vector<16x1xf32> to vector<16x256xf32>
    %29 = arith.mulf %28, %27 : vector<16x256xf32>
    %30 = arith.addf %26, %29 : vector<16x256xf32>
    %31 = vector.extract_strided_slice %12 {offsets = [0, 32], sizes = [16, 256], strides = [1, 1]} : vector<16x288xf32> to vector<16x256xf32>
    %32 = vector.broadcast %21 : vector<16x1xf32> to vector<16x256xf32>
    %33 = arith.mulf %32, %31 : vector<16x256xf32>
    %34 = arith.addf %30, %33 : vector<16x256xf32>
    %35 = vector.extract_strided_slice %13 {offsets = [0, 0], sizes = [16, 256], strides = [1, 1]} : vector<16x288xf32> to vector<16x256xf32>
    %36 = vector.broadcast %16 : vector<16x1xf32> to vector<16x256xf32>
    %37 = arith.mulf %36, %35 : vector<16x256xf32>
    %38 = vector.extract_strided_slice %13 {offsets = [0, 16], sizes = [16, 256], strides = [1, 1]} : vector<16x288xf32> to vector<16x256xf32>
    %39 = vector.broadcast %19 : vector<16x1xf32> to vector<16x256xf32>
    %40 = arith.mulf %39, %38 : vector<16x256xf32>
    %41 = arith.addf %37, %40 : vector<16x256xf32>
    %42 = vector.extract_strided_slice %13 {offsets = [0, 32], sizes = [16, 256], strides = [1, 1]} : vector<16x288xf32> to vector<16x256xf32>
    %43 = vector.broadcast %22 : vector<16x1xf32> to vector<16x256xf32>
    %44 = arith.mulf %43, %42 : vector<16x256xf32>
    %45 = arith.addf %41, %44 : vector<16x256xf32>
    %46 = vector.extract_strided_slice %14 {offsets = [0, 0], sizes = [16, 256], strides = [1, 1]} : vector<16x288xf32> to vector<16x256xf32>
    %47 = vector.broadcast %17 : vector<16x1xf32> to vector<16x256xf32>
    %48 = arith.mulf %47, %46 : vector<16x256xf32>
    %49 = vector.extract_strided_slice %14 {offsets = [0, 16], sizes = [16, 256], strides = [1, 1]} : vector<16x288xf32> to vector<16x256xf32>
    %50 = vector.broadcast %20 : vector<16x1xf32> to vector<16x256xf32>
    %51 = arith.mulf %50, %49 : vector<16x256xf32>
    %52 = arith.addf %48, %51 : vector<16x256xf32>
    %53 = vector.extract_strided_slice %14 {offsets = [0, 32], sizes = [16, 256], strides = [1, 1]} : vector<16x288xf32> to vector<16x256xf32>
    %54 = vector.broadcast %23 : vector<16x1xf32> to vector<16x256xf32>
    %55 = arith.mulf %54, %53 : vector<16x256xf32>
    %56 = arith.addf %52, %55 : vector<16x256xf32>
    %57 = vector.broadcast %10 : vector<1x256xf32> to vector<16x256xf32>
    %58 = arith.mulf %57, %34 : vector<16x256xf32>
    %59 = arith.addf %58, %45 : vector<16x256xf32>
    %60 = vector.broadcast %11 : vector<1x256xf32> to vector<16x256xf32>
    %61 = arith.mulf %60, %56 : vector<16x256xf32>
    %62 = arith.addf %59, %61 : vector<16x256xf32>
    %c0_9 = arith.constant 0 : index
    %c0_10 = arith.constant 0 : index
    %63 = vector.load %arg9[%c0_9, %c0_10] : memref<16x256xf32, #tpu.memory_space<vmem>>, vector<16x256xf32>
    tpu.vector_store %arg9[%c0_9, %c0_10], %62 {strides = array<i32>} : memref<16x256xf32, #tpu.memory_space<vmem>>, vector<16x256xf32>,
    %c0_11 = arith.constant 0 : index
    %c0_12 = arith.constant 0 : index
    %64 = vector.load %arg9[%c0_11, %c0_12] : memref<16x256xf32, #tpu.memory_space<vmem>>, vector<8x256xf32>
    %c8 = arith.constant 8 : index
    %c0_13 = arith.constant 0 : index
    %65 = vector.load %arg9[%c8, %c0_13] : memref<16x256xf32, #tpu.memory_space<vmem>>, vector<8x256xf32>
    %cst_14 = arith.constant 5.000000e-01 : f32
    %66 = vector.broadcast %cst_14 : f32 to vector<8x256xf32>
    %67 = arith.mulf %66, %64 : vector<8x256xf32>
    %68 = math.tanh %67 : vector<8x256xf32>
    %cst_15 = arith.constant 1.000000e+00 : f32
    %69 = vector.broadcast %cst_15 : f32 to vector<8x256xf32>
    %70 = arith.addf %68, %69 : vector<8x256xf32>
    %cst_16 = arith.constant 5.000000e-01 : f32
    %71 = vector.broadcast %cst_16 : f32 to vector<8x256xf32>
    %72 = arith.mulf %71, %70 : vector<8x256xf32>
    %73 = arith.mulf %72, %65 : vector<8x256xf32>
    %c0_17 = arith.constant 0 : index
    %c0_18 = arith.constant 0 : index
    %74 = vector.load %arg9[%c0_17, %c0_18] : memref<16x256xf32, #tpu.memory_space<vmem>>, vector<8x256xf32>
    tpu.vector_store %arg9[%c0_17, %c0_18], %73 {strides = array<i32>} : memref<16x256xf32, #tpu.memory_space<vmem>>, vector<8x256xf32>,
    %cst_19 = arith.constant 5.000000e-01 : f32
    %75 = vector.broadcast %cst_19 : f32 to vector<8x256xf32>
    %76 = arith.mulf %75, %65 : vector<8x256xf32>
    %77 = math.tanh %76 : vector<8x256xf32>
    %cst_20 = arith.constant 1.000000e+00 : f32
    %78 = vector.broadcast %cst_20 : f32 to vector<8x256xf32>
    %79 = arith.addf %77, %78 : vector<8x256xf32>
    %cst_21 = arith.constant 5.000000e-01 : f32
    %80 = vector.broadcast %cst_21 : f32 to vector<8x256xf32>
    %81 = arith.mulf %80, %79 : vector<8x256xf32>
    %c0_22 = arith.constant 0 : index
    %c0_23 = arith.constant 0 : index
    %82 = vector.load %arg9[%c0_22, %c0_23] : memref<16x256xf32, #tpu.memory_space<vmem>>, vector<8x256xf32>
    %83 = arith.mulf %81, %82 : vector<8x256xf32>
    %c8_24 = arith.constant 8 : index
    %c0_25 = arith.constant 0 : index
    %84 = vector.load %arg9[%c8_24, %c0_25] : memref<16x256xf32, #tpu.memory_space<vmem>>, vector<8x256xf32>
    tpu.vector_store %arg9[%c8_24, %c0_25], %83 {strides = array<i32>} : memref<16x256xf32, #tpu.memory_space<vmem>>, vector<8x256xf32>,
    %c0_26 = arith.constant 0 : index
    %c0_27 = arith.constant 0 : index
    %85 = vector.load %arg5[%c0_26, %c0_27] : memref<4x16xf32, #tpu.memory_space<vmem>>, vector<4x16xf32>
    %c0_28 = arith.constant 0 : index
    %c0_29 = arith.constant 0 : index
    %86 = vector.load %arg9[%c0_28, %c0_29] : memref<16x256xf32, #tpu.memory_space<vmem>>, vector<16x256xf32>
    %cst_30 = arith.constant dense<0.000000e+00> : vector<4x256xf32>
    %87 = tpu.matmul %85, %86, %cst_30 {dimension_numbers = #tpu.dot_dimension_numbers<[1], [0], [0], [1], [0, 0, 1, 1], [], []>} : vector<4x16xf32>, vector<16x256xf32>, vector<4x256xf32> -> vector<4x256xf32>
    %c0_31 = arith.constant 0 : index
    %c0_32 = arith.constant 0 : index
    %c0_33 = arith.constant 0 : index
    %88 = vector.load %arg7[%c0_31, %c0_32, %c0_33] : memref<1x4x256xf32, #tpu.memory_space<vmem>>, vector<1x4x256xf32>
    %89 = vector.shape_cast %88 : vector<1x4x256xf32> to vector<4x256xf32>
    %90 = vector.shape_cast %87 : vector<4x256xf32> to vector<1x4x256xf32>
    tpu.vector_store %arg7[%c0_31, %c0_32, %c0_33], %90 {strides = array<i32>} : memref<1x4x256xf32, #tpu.memory_space<vmem>>, vector<1x4x256xf32>,
    return
  }
  func.func @transform_1(%arg0: i32, %arg1: i32) -> (i32, i32) {
    %c0_i32 = arith.constant 0 : i32
    %c0_i32_0 = arith.constant 0 : i32
    %c0_i32_1 = arith.constant 0 : i32
    return %c0_i32, %c0_i32_0 : i32, i32
  }
  func.func @transform_2(%arg0: i32, %arg1: i32) -> (i32, i32) {
    %c0_i32 = arith.constant 0 : i32
    %c0_i32_0 = arith.constant 0 : i32
    %c0_i32_1 = arith.constant 0 : i32
    return %c0_i32, %c0_i32_0 : i32, i32
  }
  func.func @transform_3(%arg0: i32, %arg1: i32) -> (i32, i32) {
    %c0_i32 = arith.constant 0 : i32
    %c0_i32_0 = arith.constant 0 : i32
    %c0_i32_1 = arith.constant 0 : i32
    return %c0_i32, %c0_i32_0 : i32, i32
  }
  func.func @transform_4(%arg0: i32, %arg1: i32) -> (i32, i32) {
    %c0_i32 = arith.constant 0 : i32
    %c0_i32_0 = arith.constant 0 : i32
    %c0_i32_1 = arith.constant 0 : i32
    return %c0_i32, %c0_i32_0 : i32, i32
  }
  func.func @transform_5(%arg0: i32, %arg1: i32) -> (i32, i32, i32) {
    %c0_i32 = arith.constant 0 : i32
    %c0_i32_0 = arith.constant 0 : i32
    return %arg0, %c0_i32, %arg1 : i32, i32, i32
  }
}

</mosaic_0001>

<llo_original>
// kernel: tpu_custom_call.1
$region0: #{tpu_custom_call.1}
  #allocation0 [shape = 'u32[]', space=smem, size = 0x4, offset = 0x4, fixed_abs, tag = 'smem constant byte address 0x4 - core index']
  #allocation1 [shape = 'u32[72,128]{1,0:T(1,128)}', space=vmem, size = 0x9000, scoped, tag = 'internal scratch']
  #allocation2 [shape = 'f32[4,384]{1,0:T(4,128)}', space=vmem, size = 0x1800, scoped, tag = 'scratch operand']
  #allocation3 [shape = 'f32[16,256]{1,0:T(8,128)}', space=vmem, size = 0x4000, scoped, tag = 'scratch operand']
  #allocation4 [shape = 's32[1]{0}', space=sflag, size = 0x4, scoped, tag = 'scratch operand']
  #allocation9 [shape = 's32[]', space=sflag, size = 0x4, offset = 0, fixed_abs, tag = 'sflag constant byte address 0x0 - dummy sync flag']
  #allocation10 [shape = 's32[]', space=sflag, size = 0x4, offset = 0, fixed_abs, tag = 'sflag constant byte address 0x0 - dummy sync flag']
  #allocation11 [shape = 'u32[]', space=smem, size = 0x4, offset = 0x44, fixed_abs, tag = 'smem constant byte address 0x44 - assertion arg 0']
  #allocation12 [shape = 'u32[]', space=smem, size = 0x4, offset = 0x48, fixed_abs, tag = 'smem constant byte address 0x48 - assertion arg 1']
  %s0 = inlined_call_operand.hbm [shape: f32[2,4,384], index: 0, kind: input, shape index: {}]
  %s1 = inlined_call_operand.vmem [shape: f32[16,4], index: 1, kind: input, shape index: {}]
  %s2 = inlined_call_operand.vmem [shape: f32[16,9], index: 2, kind: input, shape index: {}]
  %s3 = inlined_call_operand.vmem [shape: f32[4,16], index: 3, kind: input, shape index: {}]
  %s4 = inlined_call_operand.hbm [shape: f32[2,256], index: 4, kind: input, shape index: {}]
  %s5 = inlined_call_operand.hbm [shape: f32[2,4,256], index: 5, kind: output, shape index: {}]
  %s6 = sld [smem:[#allocation0]]
  $region57: #{tpu_custom_call.1} parent=0
    _
  %s8 = ssub.s32 1, %s6
  %s9 = scalar_select 0, %s8, %s6
  $region1: #{tpu_custom_call.1} parent=0
    #allocation5 [shape = 'u8[2048]{0}', space=vmem, size = 0x800, scoped, tag = 'input window, operand 4, single buffered']
    #allocation6 [shape = 's32[2]{0}', space=sflag, size = 0x8, scoped, tag = 'scoped memory for tpu_custom_call.1']
    #allocation7 [shape = 's32[2]{0}', space=sflag, size = 0x8, scoped, tag = 'scoped memory for tpu_custom_call.1']
    #allocation8 [shape = 'u8[8192]{0}', space=vmem, size = 0x2000, scoped, tag = 'output window, operand 0']
    %10 = vsyncpa [#allocation6], 0
    %11 = vsyncpa [#allocation7], 0
    %s12 = scalar_lea.sflag [#allocation7], 1
    %13 = vsyncpa %s12, 0
    loop: start=0, step=1, limit=4
    $region2: #{tpu_custom_call.1} parent=1 // loop_pre_header
      _
    $region3: #{tpu_custom_call.1} parent=1 // loop_header
      %s15 = sphi 0, %s19
      %p16 = scmp.ge.s32.totalorder %s15, 4
      %s22 = sphi 0, %s34
      %s23 = sphi 0, %s30
      %s24 = sphi 0, %s22
      %s25 = sphi 0, %s23
      %s26 = sphi 0, %s24
      %s27 = sphi 0, %s25
      %s35 = sphi 0, %s35
      %s37 = sphi 0, %s35
      %s38 = sphi 0, %s37
      %s52 = sphi 0, %s38
      %s56 = sphi 0, %s56
      %s58 = sphi 0, %s56
      %s59 = sphi 0, %s58
      %s73 = sphi 0, %s59
      %s77 = sphi 0, %s77
      %s79 = sphi 0, %s77
      %s80 = sphi 0, %s79
      %s94 = sphi 0, %s80
      %s98 = sphi 0, %s98
      %s100 = sphi 0, %s98
      %s101 = sphi 0, %s100
      %s115 = sphi 0, %s101
      %s123 = sphi 0, %s125
      %s126 = sphi 0, %s123
      %s127 = sphi 0, %s126
      %s143 = sphi 0, %s127
    $region4: #{tpu_custom_call.1} parent=1 // loop_header_branch
      %18 = sbr.rel (%p16) target = $region8
    $region5: #{tpu_custom_call.1} parent=1 // loop_body
      %s20 = ssub.s32 %s15, 1
      %s21 = ssub.s32 %s15, 2
      %s28 = sadd.s32 1, %s23
      %p29 = scmp.ge.s32.totalorder %s28, 1
      %s30 = scalar_select %p29, 0, %s28
      %s31 = sadd.s32 1, %s22
      %s32 = scalar_select %p29, %s31, %s22
      %p33 = scmp.ge.s32.totalorder %s32, 2
      %s34 = scalar_select %p33, 0, %s32
      %s36 = sadd.s32 %s35, 1
      %p39 = scmp.eq.s32.totalorder %s15, 1
      %p40 = scmp.ne.s32.totalorder %s35, %s37
      %p41 = scmp.eq.s32.totalorder %s15, 0
      %p42 = por %p40, %p41
      %p43 = scmp.ne.s32.totalorder %s35, %s37
      %p44 = scmp.eq.s32.totalorder %s20, 1
      %p45 = por %p43, %p44
      %p46 = scmp.ne.s32.totalorder %s37, %s38
      %p47 = scmp.eq.s32.totalorder %s20, 0
      %p48 = por %p46, %p47
      %p49 = scmp.ne.s32.totalorder %s37, %s38
      %p50 = scmp.eq.s32.totalorder %s21, 1
      %p51 = por %p49, %p50
      %p53 = scmp.ne.s32.totalorder %s38, %s52
      %p54 = scmp.eq.s32.totalorder %s21, 0
      %p55 = por %p53, %p54
      %s57 = sadd.s32 %s56, 1
      %p60 = scmp.eq.s32.totalorder %s15, 1
      %p61 = scmp.ne.s32.totalorder %s56, %s58
      %p62 = scmp.eq.s32.totalorder %s15, 0
      %p63 = por %p61, %p62
      %p64 = scmp.ne.s32.totalorder %s56, %s58
      %p65 = scmp.eq.s32.totalorder %s20, 1
      %p66 = por %p64, %p65
      %p67 = scmp.ne.s32.totalorder %s58, %s59
      %p68 = scmp.eq.s32.totalorder %s20, 0
      %p69 = por %p67, %p68
      %p70 = scmp.ne.s32.totalorder %s58, %s59
      %p71 = scmp.eq.s32.totalorder %s21, 1
      %p72 = por %p70, %p71
      %p74 = scmp.ne.s32.totalorder %s59, %s73
      %p75 = scmp.eq.s32.totalorder %s21, 0
      %p76 = por %p74, %p75
      %s78 = sadd.s32 %s77, 1
      %p81 = scmp.eq.s32.totalorder %s15, 1
      %p82 = scmp.ne.s32.totalorder %s77, %s79
      %p83 = scmp.eq.s32.totalorder %s15, 0
      %p84 = por %p82, %p83
      %p85 = scmp.ne.s32.totalorder %s77, %s79
      %p86 = scmp.eq.s32.totalorder %s20, 1
      %p87 = por %p85, %p86
      %p88 = scmp.ne.s32.totalorder %s79, %s80
      %p89 = scmp.eq.s32.totalorder %s20, 0
      %p90 = por %p88, %p89
      %p91 = scmp.ne.s32.totalorder %s79, %s80
      %p92 = scmp.eq.s32.totalorder %s21, 1
      %p93 = por %p91, %p92
      %p95 = scmp.ne.s32.totalorder %s80, %s94
      %p96 = scmp.eq.s32.totalorder %s21, 0
      %p97 = por %p95, %p96
      %s99 = sadd.s32 %s98, 1
      %p102 = scmp.eq.s32.totalorder %s15, 1
      %p103 = scmp.ne.s32.totalorder %s98, %s100
      %p104 = scmp.eq.s32.totalorder %s15, 0
      %p105 = por %p103, %p104
      %p106 = scmp.ne.s32.totalorder %s98, %s100
      %p107 = scmp.eq.s32.totalorder %s20, 1
      %p108 = por %p106, %p107
      %p109 = scmp.ne.s32.totalorder %s100, %s101
      %p110 = scmp.eq.s32.totalorder %s20, 0
      %p111 = por %p109, %p110
      %p112 = scmp.ne.s32.totalorder %s100, %s101
      %p113 = scmp.eq.s32.totalorder %s21, 1
      %p114 = por %p112, %p113
      %p116 = scmp.ne.s32.totalorder %s101, %s115
      %p117 = scmp.eq.s32.totalorder %s21, 0
      %p118 = por %p116, %p117
      %s119 = ssub.s32 %s22, %s34
      %s120 = ssub.s32 %s23, %s30
      %s121 = sor.u32 %s119, %s120
      %p122 = scmp.eq.s32.totalorder %s121, 0
      %s124 = sadd.s32 %s123, 1
      %s125 = scalar_select %p122, %s123, %s124
      %p128 = pneg %p122
      %p129 = scmp.eq.s32.totalorder %s15, 1
      %p130 = por %p128, %p129
      %p131 = scmp.ne.s32.totalorder %s123, %s126
      %p132 = scmp.eq.s32.totalorder %s15, 0
      %p133 = por %p131, %p132
      %p134 = scmp.ne.s32.totalorder %s123, %s126
      %p135 = scmp.eq.s32.totalorder %s20, 1
      %p136 = por %p134, %p135
      %p137 = scmp.ne.s32.totalorder %s126, %s127
      %p138 = scmp.eq.s32.totalorder %s20, 0
      %p139 = por %p137, %p138
      %p140 = scmp.ne.s32.totalorder %s126, %s127
      %p141 = scmp.eq.s32.totalorder %s21, 1
      %p142 = por %p140, %p141
      %p144 = scmp.ne.s32.totalorder %s127, %s143
      %p145 = scmp.eq.s32.totalorder %s21, 0
      %p146 = por %p144, %p145
      %p147 = scmp.le.s32.totalorder 1, %s15
      %p148 = scmp.lt.s32.totalorder %s15, 3
      %p149 = pnand %p147, %p148
      %p150 = pneg %p149
      // Predicated region
      $region9: #{tpu_custom_call.1} parent=5 // pred_check
        _
      $region10: #{tpu_custom_call.1} parent=5 // pred_check_branch
        %152 = sbr.rel (%p149) target = $region12
      $region11: #{tpu_custom_call.1} parent=5 // pred_region
        %s153 = ssub.s32 %s15, 1
        // Predicated region
        $region13: #{tpu_custom_call.1} parent=11 // pred_check
          %p154 = pneg %p48
        $region14: #{tpu_custom_call.1} parent=11 // pred_check_branch
          %156 = sbr.rel (%p154) target = $region16
        $region15: #{tpu_custom_call.1} parent=11 // pred_region
          _
        $region16: #{tpu_custom_call.1} parent=11 // pred_fallthru
          _
        // Predicated region
        $region17: #{tpu_custom_call.1} parent=11 // pred_check
          %p157 = pneg %p69
        $region18: #{tpu_custom_call.1} parent=11 // pred_check_branch
          %159 = sbr.rel (%p157) target = $region20
        $region19: #{tpu_custom_call.1} parent=11 // pred_region
          _
        $region20: #{tpu_custom_call.1} parent=11 // pred_fallthru
          _
        // Predicated region
        $region21: #{tpu_custom_call.1} parent=11 // pred_check
          %p160 = pneg %p90
        $region22: #{tpu_custom_call.1} parent=11 // pred_check_branch
          %162 = sbr.rel (%p160) target = $region24
        $region23: #{tpu_custom_call.1} parent=11 // pred_region
          _
        $region24: #{tpu_custom_call.1} parent=11 // pred_fallthru
          _
        // Predicated region
        $region25: #{tpu_custom_call.1} parent=11 // pred_check
          %p163 = pneg %p111
        $region26: #{tpu_custom_call.1} parent=11 // pred_check_branch
          %165 = sbr.rel (%p163) target = $region28
        $region27: #{tpu_custom_call.1} parent=11 // pred_region
          %167 = vsyncadd [#allocation6], 0
          %s169 = sshll.u32 %s4, 4
          %s170 = int_to_ptr.hbm [resolvable:$true] %s169
          %s171 = sshll.u32 [#allocation5], 4
          %s172 = int_to_ptr.vmem [resolvable:$true] %s171
          %174 = dma.hbm_to_vmem [thread:$0]  %s170, 64, %s172, [#allocation6]
        $region28: #{tpu_custom_call.1} parent=11 // pred_fallthru
          _
      $region12: #{tpu_custom_call.1} parent=5 // pred_fallthru
        _
      %p175 = scmp.lt.s32.totalorder %s15, 2
      // Predicated region
      $region29: #{tpu_custom_call.1} parent=5 // pred_check
        %p176 = pneg %p175
      $region30: #{tpu_custom_call.1} parent=5 // pred_check_branch
        %178 = sbr.rel (%p176) target = $region32
      $region31: #{tpu_custom_call.1} parent=5 // pred_region
        _
      $region32: #{tpu_custom_call.1} parent=5 // pred_fallthru
        _
      %p179 = scmp.le.s32.totalorder 1, %s15
      %p180 = scmp.lt.s32.totalorder %s15, 3
      %p181 = pnand %p179, %p180
      %p182 = pneg %p181
      // Predicated region
      $region33: #{tpu_custom_call.1} parent=5 // pred_check
        _
      $region34: #{tpu_custom_call.1} parent=5 // pred_check_branch
        %184 = sbr.rel (%p181) target = $region36
      $region35: #{tpu_custom_call.1} parent=5 // pred_region
        %s185 = ssub.s32 %s15, 1
        // Predicated region
        $region37: #{tpu_custom_call.1} parent=35 // pred_check
          %p186 = pneg %p111
        $region38: #{tpu_custom_call.1} parent=35 // pred_check_branch
          %188 = sbr.rel (%p186) target = $region40
        $region39: #{tpu_custom_call.1} parent=35 // pred_region
          %190 = dma.done [#allocation6], 64
        $region40: #{tpu_custom_call.1} parent=35 // pred_fallthru
          _
        %p191 = pneg %p48
        %p192 = pneg %p45
        %p193 = pneg %p69
        %p194 = pneg %p66
        %p195 = pneg %p90
        %p196 = pneg %p87
        %p197 = pneg %p111
        %p198 = pneg %p108
        %p199 = pneg %p139
        %p200 = pneg %p136
        %s201 = sand.u32 %s126, 1
        %s202 = scalar_lea.sflag [#allocation7], %s201
        %s203 = sand.u32 %s126, 1
        %s204 = smul.addr %s203, 8
        %s205 = scalar_lea.vmem [#allocation8], %s204
        %s206 = smul.u32 2, %s25
        %s207 = smul.u32 %s25, 256
        %s208 = sshra.s32 %s207, 7
        %s209 = sand.u32 %s207, 127
        %s210 = smul.u32 %s24, 3
        %s211 = sadd.s32 %s208, %s210
        %s212 = smul.addr %s211, 4
        %s213 = scalar_lea.hbm %s0, %s212
        // Predicated region
        $region41: #{tpu_custom_call.1} parent=35 // pred_check
          _
        $region42: #{tpu_custom_call.1} parent=35 // pred_check_branch
          %215 = sbr.rel target = $region44
        $region43: #{tpu_custom_call.1} parent=35 // pred_region
          %216 = sst [smem:[#allocation11]] [#allocation10]
          %217 = sst [smem:[#allocation12]] [#allocation9]
        $region44: #{tpu_custom_call.1} parent=35 // pred_fallthru
          _
        %219 = shalt.err (0)
        %s221 = sshll.u32 %s213, 4
        %s222 = int_to_ptr.hbm [resolvable:$true] %s221
        %s223 = sshll.u32 [#allocation2], 4
        %s224 = int_to_ptr.vmem [resolvable:$true] %s223
        %226 = dma.hbm_to_vmem [thread:$0]  %s222, 192, %s224, [#allocation4]
        %s227 = smul.u32 4, 1
        %s228 = smul.u32 %s227, 3
        %s229 = sshll.u32 %s228, 4
        %230 = dma.done [#allocation4], %s229
        %v231 = vld [vmem:[#allocation2] sm:$0xff]
        %v232 = vld [vmem:[#allocation2 + $0x8] sm:$0xf]
        %v233 = vld [vmem:[%s1] sm:$0xff]
        %v234 = vld [vmem:[%s1 + $0x8] sm:$0xff]
        %237 = vst [vmem:[#allocation1] ss:$2 sm:$0xff] %v231
        %s238 = scalar_lea.vmem [#allocation1], 16
        %239 = vst [vmem:[%s238] ss:$2 sm:$0xff] %v232
        %v240 = vld.sshfl [vmem:[#allocation1] sm:$0xff pattern:$0x75316420]
        %v241 = vld.sshfl [vmem:[#allocation1 + $0x8] sm:$0xff pattern:$0x75316420]
        %v242 = vld.sshfl [vmem:[#allocation1 + $0x10] sm:$0xff pattern:$0x75316420]
        %vm243 = vcmask 31744
        %v245 = vsel %vm243, %v233, 0
        %v248 = vsel %vm243, %v234, 0
        %vm250 = vcmask 1043456
        %v251 = vsel %vm250, %v240, 0
        %v253 = vsel %vm250, %v241, 0
        %v255 = vsel %vm250, %v242, 0
        %257 = vmatpush.msra.mxu0 0.0
        %258 = vmatpush.msra.mxu0 0.0
        %259 = vmatpush.msra.mxu0 0.0
        %260 = vmatpush.msra.mxu0 0.0
        %261 = vmatpush.msra.mxu0 0.0
        %262 = vmatpush.msra.mxu0 0.0
        %263 = vmatpush.msra.mxu0 0.0
        %264 = vmatpush.msra.mxu0 0.0
        %265 = vmatpush.msra.mxu0 0.0
        %266 = vmatpush.msra.mxu0 0.0
        %267 = vmatpush.msra.mxu0 0.0
        %268 = vmatpush.msra.mxu0 0.0
        %269 = vmatpush.msra.mxu0 0.0
        %270 = vmatpush.msra.mxu0 0.0
        %271 = vmatpush.msra.mxu0 0.0
        %272 = vmatpush.msra.mxu0 %v251
        %273 = vmatmul.f32.gmra.mxu0 %v245
        %v274 = vpop.f32.mrf.mxu0
        %v275 = vadd.f32 0.0, %v274
        %276 = vmatmul.f32.gmra.mxu0 %v248
        %v277 = vpop.f32.mrf.mxu0
        %v278 = vadd.f32 0.0, %v277
        %279 = vdwg.mxu0
        %280 = vmatpush.msra.mxu0 0.0
        %281 = vmatpush.msra.mxu0 0.0
        %282 = vmatpush.msra.mxu0 0.0
        %283 = vmatpush.msra.mxu0 0.0
        %284 = vmatpush.msra.mxu0 0.0
        %285 = vmatpush.msra.mxu0 0.0
        %286 = vmatpush.msra.mxu0 0.0
        %287 = vmatpush.msra.mxu0 0.0
        %288 = vmatpush.msra.mxu0 0.0
        %289 = vmatpush.msra.mxu0 0.0
        %290 = vmatpush.msra.mxu0 0.0
        %291 = vmatpush.msra.mxu0 0.0
        %292 = vmatpush.msra.mxu0 0.0
        %293 = vmatpush.msra.mxu0 0.0
        %294 = vmatpush.msra.mxu0 0.0
        %295 = vmatpush.msra.mxu0 %v253
        %296 = vmatmul.f32.gmra.mxu0 %v245
        %v297 = vpop.f32.mrf.mxu0
        %v298 = vadd.f32 0.0, %v297
        %299 = vmatmul.f32.gmra.mxu0 %v248
        %v300 = vpop.f32.mrf.mxu0
        %v301 = vadd.f32 0.0, %v300
        %302 = vdwg.mxu0
        %303 = vmatpush.msra.mxu0 0.0
        %304 = vmatpush.msra.mxu0 0.0
        %305 = vmatpush.msra.mxu0 0.0
        %306 = vmatpush.msra.mxu0 0.0
        %307 = vmatpush.msra.mxu0 0.0
        %308 = vmatpush.msra.mxu0 0.0
        %309 = vmatpush.msra.mxu0 0.0
        %310 = vmatpush.msra.mxu0 0.0
        %311 = vmatpush.msra.mxu0 0.0
        %312 = vmatpush.msra.mxu0 0.0
        %313 = vmatpush.msra.mxu0 0.0
        %314 = vmatpush.msra.mxu0 0.0
        %315 = vmatpush.msra.mxu0 0.0
        %316 = vmatpush.msra.mxu0 0.0
        %317 = vmatpush.msra.mxu0 0.0
        %318 = vmatpush.msra.mxu0 %v255
        %319 = vmatmul.f32.gmra.mxu0 %v245
        %v320 = vpop.f32.mrf.mxu0
        %v321 = vadd.f32 0.0, %v320
        %322 = vmatmul.f32.gmra.mxu0 %v248
        %v323 = vpop.f32.mrf.mxu0
        %v324 = vadd.f32 0.0, %v323
        %325 = vdwg.mxu0
        %v326 = vld [vmem:[%s2] sm:$0xff]
        %v327 = vld [vmem:[%s2 + $0x8] sm:$0xff]
        %v328 = vld [vmem:[#allocation5] ss:$2 sm:$0x3]
        %s329 = scalar_lea.vmem [#allocation5], 1
        %v330 = vld [vmem:[%s329] ss:$2 sm:$0x3]
        %332 = vset.pattern.permute.xlu0 0
        %333 = vperm.xlu0 %332, %v326
        %v334 = vpop.permute.xlu0 %333
        %337 = vset.pattern.permute.xlu0 0
        %338 = vperm.xlu0 %337, %v327
        %v339 = vpop.permute.xlu0 %338
        %v341 = vmul.f32 %v334, %v275
        %v342 = vmul.f32 %v334, %v298
        %v343 = vmul.f32 %v339, %v278
        %v344 = vmul.f32 %v339, %v301
        %345 = vset.pattern.permute.xlu0 3
        %346 = vperm.xlu0 %345, %v326
        %v347 = vpop.permute.xlu0 %346
        %349 = vset.pattern.permute.xlu0 3
        %350 = vperm.xlu0 %349, %v327
        %v351 = vpop.permute.xlu0 %350
        %v353 = vmul.f32 %v347, %v275
        %v354 = vmul.f32 %v347, %v298
        %v355 = vmul.f32 %v347, %v321
        %v356 = vmul.f32 %v351, %v278
        %v357 = vmul.f32 %v351, %v301
        %v358 = vmul.f32 %v351, %v324
        %365 = vrot.lane.b32.xlu0 %v353, 112
        %v366 = vpop.permute.xlu0 %365
        %367 = vrot.lane.b32.xlu0 %v354, 112
        %v368 = vpop.permute.xlu0 %367
        %369 = vrot.lane.b32.xlu0 %v355, 112
        %v370 = vpop.permute.xlu0 %369
        %371 = vrot.lane.b32.xlu0 %v356, 112
        %v372 = vpop.permute.xlu0 %371
        %373 = vrot.lane.b32.xlu0 %v357, 112
        %v374 = vpop.permute.xlu0 %373
        %375 = vrot.lane.b32.xlu0 %v358, 112
        %v376 = vpop.permute.xlu0 %375
        %vm377 = vcmask 916480
        %v378 = vsel %vm377, %v366, %v368
        %v379 = vsel %vm377, %v368, %v370
        %v380 = vsel %vm377, %v372, %v374
        %v381 = vsel %vm377, %v374, %v376
        %v386 = vadd.f32 %v341, %v378
        %v387 = vadd.f32 %v342, %v379
        %v388 = vadd.f32 %v343, %v380
        %v389 = vadd.f32 %v344, %v381
        %390 = vset.pattern.permute.xlu0 6
        %391 = vperm.xlu0 %390, %v326
        %v392 = vpop.permute.xlu0 %391
        %394 = vset.pattern.permute.xlu0 6
        %395 = vperm.xlu0 %394, %v327
        %v396 = vpop.permute.xlu0 %395
        %v398 = vmul.f32 %v392, %v275
        %v399 = vmul.f32 %v392, %v298
        %v400 = vmul.f32 %v392, %v321
        %v401 = vmul.f32 %v396, %v278
        %v402 = vmul.f32 %v396, %v301
        %v403 = vmul.f32 %v396, %v324
        %410 = vrot.lane.b32.xlu0 %v398, 96
        %v411 = vpop.permute.xlu0 %410
        %412 = vrot.lane.b32.xlu0 %v399, 96
        %v413 = vpop.permute.xlu0 %412
        %414 = vrot.lane.b32.xlu0 %v400, 96
        %v415 = vpop.permute.xlu0 %414
        %416 = vrot.lane.b32.xlu0 %v401, 96
        %v417 = vpop.permute.xlu0 %416
        %418 = vrot.lane.b32.xlu0 %v402, 96
        %v419 = vpop.permute.xlu0 %418
        %420 = vrot.lane.b32.xlu0 %v403, 96
        %v421 = vpop.permute.xlu0 %420
        %vm422 = vcmask 785408
        %v423 = vsel %vm422, %v411, %v413
        %v424 = vsel %vm422, %v413, %v415
        %v425 = vsel %vm422, %v417, %v419
        %v426 = vsel %vm422, %v419, %v421
        %v431 = vadd.f32 %v386, %v423
        %v432 = vadd.f32 %v387, %v424
        %v433 = vadd.f32 %v388, %v425
        %v434 = vadd.f32 %v389, %v426
        %435 = vset.pattern.permute.xlu0 1
        %436 = vperm.xlu0 %435, %v326
        %v437 = vpop.permute.xlu0 %436
        %439 = vset.pattern.permute.xlu0 1
        %440 = vperm.xlu0 %439, %v327
        %v441 = vpop.permute.xlu0 %440
        %v443 = vmul.f32 %v437, %v275
        %v444 = vmul.f32 %v437, %v298
        %v445 = vmul.f32 %v437, %v321
        %v446 = vmul.f32 %v441, %v278
        %v447 = vmul.f32 %v441, %v301
        %v448 = vmul.f32 %v441, %v324
        %449 = vset.pattern.permute.xlu0 4
        %450 = vperm.xlu0 %449, %v326
        %v451 = vpop.permute.xlu0 %450
        %453 = vset.pattern.permute.xlu0 4
        %454 = vperm.xlu0 %453, %v327
        %v455 = vpop.permute.xlu0 %454
        %v457 = vmul.f32 %v451, %v275
        %v458 = vmul.f32 %v451, %v298
        %v459 = vmul.f32 %v451, %v321
        %v460 = vmul.f32 %v455, %v278
        %v461 = vmul.f32 %v455, %v301
        %v462 = vmul.f32 %v455, %v324
        %469 = vrot.lane.b32.xlu0 %v457, 112
        %v470 = vpop.permute.xlu0 %469
        %471 = vrot.lane.b32.xlu0 %v458, 112
        %v472 = vpop.permute.xlu0 %471
        %473 = vrot.lane.b32.xlu0 %v459, 112
        %v474 = vpop.permute.xlu0 %473
        %475 = vrot.lane.b32.xlu0 %v460, 112
        %v476 = vpop.permute.xlu0 %475
        %477 = vrot.lane.b32.xlu0 %v461, 112
        %v478 = vpop.permute.xlu0 %477
        %479 = vrot.lane.b32.xlu0 %v462, 112
        %v480 = vpop.permute.xlu0 %479
        %v481 = vsel %vm377, %v470, %v472
        %v482 = vsel %vm377, %v472, %v474
        %v483 = vsel %vm377, %v476, %v478
        %v484 = vsel %vm377, %v478, %v480
        %v491 = vadd.f32 %v443, %v481
        %v492 = vadd.f32 %v444, %v482
        %v493 = vadd.f32 %v445, %v474
        %v494 = vadd.f32 %v446, %v483
        %v495 = vadd.f32 %v447, %v484
        %v496 = vadd.f32 %v448, %v480
        %497 = vset.pattern.permute.xlu0 7
        %498 = vperm.xlu0 %497, %v326
        %v499 = vpop.permute.xlu0 %498
        %501 = vset.pattern.permute.xlu0 7
        %502 = vperm.xlu0 %501, %v327
        %v503 = vpop.permute.xlu0 %502
        %v505 = vmul.f32 %v499, %v275
        %v506 = vmul.f32 %v499, %v298
        %v507 = vmul.f32 %v499, %v321
        %v508 = vmul.f32 %v503, %v278
        %v509 = vmul.f32 %v503, %v301
        %v510 = vmul.f32 %v503, %v324
        %517 = vrot.lane.b32.xlu0 %v505, 96
        %v518 = vpop.permute.xlu0 %517
        %519 = vrot.lane.b32.xlu0 %v506, 96
        %v520 = vpop.permute.xlu0 %519
        %521 = vrot.lane.b32.xlu0 %v507, 96
        %v522 = vpop.permute.xlu0 %521
        %523 = vrot.lane.b32.xlu0 %v508, 96
        %v524 = vpop.permute.xlu0 %523
        %525 = vrot.lane.b32.xlu0 %v509, 96
        %v526 = vpop.permute.xlu0 %525
        %527 = vrot.lane.b32.xlu0 %v510, 96
        %v528 = vpop.permute.xlu0 %527
        %v529 = vsel %vm422, %v518, %v520
        %v530 = vsel %vm422, %v520, %v522
        %v531 = vsel %vm422, %v524, %v526
        %v532 = vsel %vm422, %v526, %v528
        %v539 = vadd.f32 %v491, %v529
        %v540 = vadd.f32 %v492, %v530
        %v541 = vadd.f32 %v493, %v522
        %v542 = vadd.f32 %v494, %v531
        %v543 = vadd.f32 %v495, %v532
        %v544 = vadd.f32 %v496, %v528
        %545 = vset.pattern.permute.xlu0 2
        %546 = vperm.xlu0 %545, %v326
        %v547 = vpop.permute.xlu0 %546
        %549 = vset.pattern.permute.xlu0 2
        %550 = vperm.xlu0 %549, %v327
        %v551 = vpop.permute.xlu0 %550
        %v553 = vmul.f32 %v547, %v275
        %v554 = vmul.f32 %v547, %v298
        %v555 = vmul.f32 %v547, %v321
        %v556 = vmul.f32 %v551, %v278
        %v557 = vmul.f32 %v551, %v301
        %v558 = vmul.f32 %v551, %v324
        %559 = vset.pattern.permute.xlu0 5
        %560 = vperm.xlu0 %559, %v326
        %v561 = vpop.permute.xlu0 %560
        %563 = vset.pattern.permute.xlu0 5
        %564 = vperm.xlu0 %563, %v327
        %v565 = vpop.permute.xlu0 %564
        %v567 = vmul.f32 %v561, %v275
        %v568 = vmul.f32 %v561, %v298
        %v569 = vmul.f32 %v561, %v321
        %v570 = vmul.f32 %v565, %v278
        %v571 = vmul.f32 %v565, %v301
        %v572 = vmul.f32 %v565, %v324
        %579 = vrot.lane.b32.xlu0 %v567, 112
        %v580 = vpop.permute.xlu0 %579
        %581 = vrot.lane.b32.xlu0 %v568, 112
        %v582 = vpop.permute.xlu0 %581
        %583 = vrot.lane.b32.xlu0 %v569, 112
        %v584 = vpop.permute.xlu0 %583
        %585 = vrot.lane.b32.xlu0 %v570, 112
        %v586 = vpop.permute.xlu0 %585
        %587 = vrot.lane.b32.xlu0 %v571, 112
        %v588 = vpop.permute.xlu0 %587
        %589 = vrot.lane.b32.xlu0 %v572, 112
        %v590 = vpop.permute.xlu0 %589
        %v591 = vsel %vm377, %v580, %v582
        %v592 = vsel %vm377, %v582, %v584
        %v593 = vsel %vm377, %v586, %v588
        %v594 = vsel %vm377, %v588, %v590
        %v601 = vadd.f32 %v553, %v591
        %v602 = vadd.f32 %v554, %v592
        %v603 = vadd.f32 %v555, %v584
        %v604 = vadd.f32 %v556, %v593
        %v605 = vadd.f32 %v557, %v594
        %v606 = vadd.f32 %v558, %v590
        %607 = vset.pattern.permute.xlu0 8
        %608 = vperm.xlu0 %607, %v326
        %v609 = vpop.permute.xlu0 %608
        %611 = vset.pattern.permute.xlu0 8
        %612 = vperm.xlu0 %611, %v327
        %v613 = vpop.permute.xlu0 %612
        %v615 = vmul.f32 %v609, %v275
        %v616 = vmul.f32 %v609, %v298
        %v617 = vmul.f32 %v609, %v321
        %v618 = vmul.f32 %v613, %v278
        %v619 = vmul.f32 %v613, %v301
        %v620 = vmul.f32 %v613, %v324
        %627 = vrot.lane.b32.xlu0 %v615, 96
        %v628 = vpop.permute.xlu0 %627
        %629 = vrot.lane.b32.xlu0 %v616, 96
        %v630 = vpop.permute.xlu0 %629
        %631 = vrot.lane.b32.xlu0 %v617, 96
        %v632 = vpop.permute.xlu0 %631
        %633 = vrot.lane.b32.xlu0 %v618, 96
        %v634 = vpop.permute.xlu0 %633
        %635 = vrot.lane.b32.xlu0 %v619, 96
        %v636 = vpop.permute.xlu0 %635
        %637 = vrot.lane.b32.xlu0 %v620, 96
        %v638 = vpop.permute.xlu0 %637
        %v639 = vsel %vm422, %v628, %v630
        %v640 = vsel %vm422, %v630, %v632
        %v641 = vsel %vm422, %v634, %v636
        %v642 = vsel %vm422, %v636, %v638
        %v649 = vadd.f32 %v601, %v639
        %v650 = vadd.f32 %v602, %v640
        %v651 = vadd.f32 %v603, %v632
        %v652 = vadd.f32 %v604, %v641
        %v653 = vadd.f32 %v605, %v642
        %v654 = vadd.f32 %v606, %v638
        %v656 = vperm.slane %v328, 0
        %v657 = vperm.slane %v328, 1
        %v660 = vmul.f32 %v656, %v431
        %v661 = vmul.f32 %v657, %v432
        %v662 = vmul.f32 %v656, %v433
        %v663 = vmul.f32 %v657, %v434
        %670 = vrot.lane.b32.xlu0 %v539, 127
        %v671 = vpop.permute.xlu0 %670
        %672 = vrot.lane.b32.xlu0 %v540, 127
        %v673 = vpop.permute.xlu0 %672
        %674 = vrot.lane.b32.xlu0 %v541, 127
        %v675 = vpop.permute.xlu0 %674
        %676 = vrot.lane.b32.xlu0 %v542, 127
        %v677 = vpop.permute.xlu0 %676
        %678 = vrot.lane.b32.xlu0 %v543, 127
        %v679 = vpop.permute.xlu0 %678
        %680 = vrot.lane.b32.xlu0 %v544, 127
        %v681 = vpop.permute.xlu0 %680
        %vm682 = vcmask 1039360
        %v683 = vsel %vm682, %v671, %v673
        %v684 = vsel %vm682, %v673, %v675
        %v685 = vsel %vm682, %v677, %v679
        %v686 = vsel %vm682, %v679, %v681
        %v691 = vadd.f32 %v660, %v683
        %v692 = vadd.f32 %v661, %v684
        %v693 = vadd.f32 %v662, %v685
        %v694 = vadd.f32 %v663, %v686
        %v696 = vperm.slane %v330, 0
        %v697 = vperm.slane %v330, 1
        %706 = vrot.lane.b32.xlu0 %v649, 126
        %v707 = vpop.permute.xlu0 %706
        %708 = vrot.lane.b32.xlu0 %v650, 126
        %v709 = vpop.permute.xlu0 %708
        %710 = vrot.lane.b32.xlu0 %v651, 126
        %v711 = vpop.permute.xlu0 %710
        %712 = vrot.lane.b32.xlu0 %v652, 126
        %v713 = vpop.permute.xlu0 %712
        %714 = vrot.lane.b32.xlu0 %v653, 126
        %v715 = vpop.permute.xlu0 %714
        %716 = vrot.lane.b32.xlu0 %v654, 126
        %v717 = vpop.permute.xlu0 %716
        %vm718 = vcmask 1031168
        %v719 = vsel %vm718, %v707, %v709
        %v720 = vsel %vm718, %v709, %v711
        %v721 = vsel %vm718, %v713, %v715
        %v722 = vsel %vm718, %v715, %v717
        %v727 = vmul.f32 %v696, %v719
        %v728 = vmul.f32 %v697, %v720
        %v729 = vmul.f32 %v696, %v721
        %v730 = vmul.f32 %v697, %v722
        %v731 = vadd.f32 %v691, %v727
        %v732 = vadd.f32 %v692, %v728
        %v733 = vadd.f32 %v693, %v729
        %v734 = vadd.f32 %v694, %v730
        %735 = vst [vmem:[#allocation3] sm:$0xff] %v731
        %736 = vst [vmem:[#allocation3 + $0x8] sm:$0xff] %v732
        %737 = vst [vmem:[#allocation3 + $0x10] sm:$0xff] %v733
        %738 = vst [vmem:[#allocation3 + $0x18] sm:$0xff] %v734
        %v739 = vld [vmem:[#allocation3] sm:$0xff]
        %v740 = vld [vmem:[#allocation3 + $0x8] sm:$0xff]
        %v741 = vld [vmem:[#allocation3 + $0x10] sm:$0xff]
        %v742 = vld [vmem:[#allocation3 + $0x18] sm:$0xff]
        %v743 = vmul.f32 %v739, 0.5
        %v744 = vmul.f32 %v740, 0.5
        %v745 = vtanh.pop %v743
        %v746 = vtanh.pop %v744
        %v747 = vadd.f32 %v745, 1.0
        %v748 = vadd.f32 %v746, 1.0
        %v749 = vmul.f32 %v747, 0.5
        %v750 = vmul.f32 %v748, 0.5
        %v751 = vmul.f32 %v749, %v741
        %v752 = vmul.f32 %v750, %v742
        %753 = vst [vmem:[#allocation3] sm:$0xff] %v751
        %754 = vst [vmem:[#allocation3 + $0x8] sm:$0xff] %v752
        %v755 = vmul.f32 %v741, 0.5
        %v756 = vmul.f32 %v742, 0.5
        %v757 = vtanh.pop %v755
        %v758 = vtanh.pop %v756
        %v759 = vadd.f32 %v757, 1.0
        %v760 = vadd.f32 %v758, 1.0
        %v761 = vmul.f32 %v759, 0.5
        %v762 = vmul.f32 %v760, 0.5
        %v763 = vld [vmem:[#allocation3] sm:$0xff]
        %v764 = vld [vmem:[#allocation3 + $0x8] sm:$0xff]
        %v765 = vmul.f32 %v761, %v763
        %v766 = vmul.f32 %v762, %v764
        %767 = vst [vmem:[#allocation3 + $0x10] sm:$0xff] %v765
        %768 = vst [vmem:[#allocation3 + $0x18] sm:$0xff] %v766
        %v769 = vld [vmem:[%s3] sm:$0xf]
        %v770 = vld [vmem:[#allocation3] sm:$0xff]
        %v771 = vld [vmem:[#allocation3 + $0x8] sm:$0xff]
        %v772 = vld [vmem:[#allocation3 + $0x10] sm:$0xff]
        %v773 = vld [vmem:[#allocation3 + $0x18] sm:$0xff]
        %vm774 = vcmask 130048
        %v776 = vsel %vm774, %v769, 0
        %778 = vmatpush.msra.mxu0 0.0
        %779 = vmatpush.msra.mxu0 0.0
        %780 = vmatpush.msra.mxu0 0.0
        %781 = vmatpush.msra.mxu0 0.0
        %782 = vmatpush.msra.mxu0 0.0
        %783 = vmatpush.msra.mxu0 0.0
        %784 = vmatpush.msra.mxu0 0.0
        %785 = vmatpush.msra.mxu0 0.0
        %786 = vmatpush.msra.mxu0 0.0
        %787 = vmatpush.msra.mxu0 0.0
        %788 = vmatpush.msra.mxu0 0.0
        %789 = vmatpush.msra.mxu0 0.0
        %790 = vmatpush.msra.mxu0 0.0
        %791 = vmatpush.msra.mxu0 0.0
        %792 = vmatpush.msra.mxu0 %v772
        %793 = vmatpush.msra.mxu0 %v770
        %794 = vmatmul.f32.gmra.mxu0 %v776
        %v795 = vpop.f32.mrf.mxu0
        %v796 = vadd.f32 0.0, %v795
        %797 = vdwg.mxu0
        %798 = vmatpush.msra.mxu0 0.0
        %799 = vmatpush.msra.mxu0 0.0
        %800 = vmatpush.msra.mxu0 0.0
        %801 = vmatpush.msra.mxu0 0.0
        %802 = vmatpush.msra.mxu0 0.0
        %803 = vmatpush.msra.mxu0 0.0
        %804 = vmatpush.msra.mxu0 0.0
        %805 = vmatpush.msra.mxu0 0.0
        %806 = vmatpush.msra.mxu0 0.0
        %807 = vmatpush.msra.mxu0 0.0
        %808 = vmatpush.msra.mxu0 0.0
        %809 = vmatpush.msra.mxu0 0.0
        %810 = vmatpush.msra.mxu0 0.0
        %811 = vmatpush.msra.mxu0 0.0
        %812 = vmatpush.msra.mxu0 %v773
        %813 = vmatpush.msra.mxu0 %v771
        %814 = vmatmul.f32.gmra.mxu0 %v776
        %v815 = vpop.f32.mrf.mxu0
        %v816 = vadd.f32 0.0, %v815
        %817 = vdwg.mxu0
        %v820 = vrot.slane %v816, 4
        %v821 = vsel %vm250, %v796, %v820
        %823 = vst [vmem:[%s205] sm:$0xff] %v821
        %s824 = sand.u32 %s126, 1
        %s825 = scalar_lea.sflag [#allocation7], %s824
        %s826 = sand.u32 %s126, 1
        %s827 = smul.addr %s826, 8
        %s828 = scalar_lea.vmem [#allocation8], %s827
        // Predicated region
        $region45: #{tpu_custom_call.1} parent=35 // pred_check
          %p829 = pneg %p136
        $region46: #{tpu_custom_call.1} parent=35 // pred_check_branch
          %831 = sbr.rel (%p829) target = $region48
        $region47: #{tpu_custom_call.1} parent=35 // pred_region
          %s832 = smul.u32 2, %s25
          %834 = vsyncadd %s825, 0
          %s835 = smul.addr %s24, 2
          %s836 = sadd.s32 %s832, %s835
          %s837 = smul.addr %s836, 4
          %s838 = scalar_lea.hbm %s5, %s837
          %s840 = sshll.u32 %s828, 4
          %s841 = int_to_ptr.vmem [resolvable:$true] %s840
          %s842 = sshll.u32 %s838, 4
          %s843 = int_to_ptr.hbm [resolvable:$true] %s842
          %845 = dma.vmem_to_hbm [thread:$0]  %s841, 128, %s843, %s825
        $region48: #{tpu_custom_call.1} parent=35 // pred_fallthru
          _
      $region36: #{tpu_custom_call.1} parent=5 // pred_fallthru
        _
      %p846 = scmp.le.s32.totalorder 2, %s15
      // Predicated region
      $region49: #{tpu_custom_call.1} parent=5 // pred_check
        %p847 = pneg %p846
      $region50: #{tpu_custom_call.1} parent=5 // pred_check_branch
        %849 = sbr.rel (%p847) target = $region52
      $region51: #{tpu_custom_call.1} parent=5 // pred_region
        %s850 = ssub.s32 %s15, 2
        // Predicated region
        $region53: #{tpu_custom_call.1} parent=51 // pred_check
          %p851 = pneg %p142
        $region54: #{tpu_custom_call.1} parent=51 // pred_check_branch
          %853 = sbr.rel (%p851) target = $region56
        $region55: #{tpu_custom_call.1} parent=51 // pred_region
          %s854 = sand.u32 %s127, 1
          %s855 = scalar_lea.sflag [#allocation7], %s854
          %s856 = sand.u32 %s127, 1
          %s857 = smul.addr %s856, 8
          %s858 = scalar_lea.vmem [#allocation8], %s857
          %860 = dma.done %s855, 128
        $region56: #{tpu_custom_call.1} parent=51 // pred_fallthru
          _
      $region52: #{tpu_custom_call.1} parent=5 // pred_fallthru
        _
    $region6: #{tpu_custom_call.1} parent=1 // loop_footer
      %s19 = sadd.s32 1, %s15
    $region7: #{tpu_custom_call.1} parent=1 // loop_footer_branch
      %14 = sbr.rel target = $region3
    $region8: #{tpu_custom_call.1} parent=1 // loop_exit
      _
    %861 = vsyncpa [#allocation6], 1
    %s862 = scalar_lea.sflag [#allocation6], 1
    %863 = vsyncpa %s862, 1
    %864 = vsyncpa [#allocation7], 1
    %s865 = scalar_lea.sflag [#allocation7], 1
    %866 = vsyncpa %s865, 1
  %867 = vsyncmov [#allocation4]
  %s868 = vpop.sfrf %867
  %p869 = scmp.eq.s32.totalorder %s868, 0
  %p870 = pneg %p869
  %872 = shalt.err (%p870)

</llo_original>
